<compile_context>
chip_gen: v5e
topology: v5e:2x2
jax: 0.10.0
libtpu: 0.0.40
codegen_flags: <defaults>
</compile_context>

<pallas_src>
import functools

import jax
import jax.numpy as jnp
from jax.experimental import pallas as pl
from jax.experimental.pallas import tpu as pltpu


def _round_up(x, m):
    return (x + m - 1) // m * m


# -----------------------------------------------------------------------------
# Kernel: one batch tile through all five layers; packed params stay resident.
# -----------------------------------------------------------------------------
def dqn5l_kernel(x_ref, w_ref, b_ref, out_ref, *, k0):
    # Layer 1: contract only over the valid (first k0) rows of the packed
    # weight slab; padded weight rows/cols are zero so padded lanes stay 0.
    h = jnp.dot(x_ref[...].astype(jnp.bfloat16), w_ref[0, :k0, :],
                preferred_element_type=jnp.float32) + b_ref[0:1, :]
    h = jnp.maximum(h, 0.0)
    for l in range(1, 4):                                   # unrolled at trace time
        h = jnp.dot(h.astype(jnp.bfloat16), w_ref[l],
                    preferred_element_type=jnp.float32) + b_ref[l:l + 1, :]
        h = jnp.maximum(h, 0.0)
    out = jnp.dot(h.astype(jnp.bfloat16), w_ref[4],
                  preferred_element_type=jnp.float32) + b_ref[4:5, :]
    out_ref[...] = out.astype(out_ref.dtype)


# -----------------------------------------------------------------------------
# One-time packing of PyTorch-layout params into the kernel layout.
#   w_packed: (5, P, P) bf16   (each layer's (in, out) weight, zero-padded)
#   b_packed: (5, P)    f32
# -----------------------------------------------------------------------------
def pack_params(params, n_observations, n_actions, n_neurons):
    P = _round_up(max(n_observations, n_neurons, n_actions, 128), 128)
    dims = [(n_observations, n_neurons),
            (n_neurons, n_neurons),
            (n_neurons, n_neurons),
            (n_neurons, n_neurons),
            (n_neurons, n_actions)]
    w_packed = jnp.zeros((5, P, P), jnp.float32)
    b_packed = jnp.zeros((5, P), jnp.float32)
    for i, (fan_in, fan_out) in enumerate(dims):
        w_packed = w_packed.at[i, :fan_in, :fan_out].set(
            params[f"w{i + 1}"].T.astype(jnp.float32))      # (in, out)
        b_packed = b_packed.at[i, :fan_out].set(
            params[f"b{i + 1}"].astype(jnp.float32))
    return w_packed.astype(jnp.bfloat16), b_packed


# -----------------------------------------------------------------------------
# Forward wrapper.
# -----------------------------------------------------------------------------
def dqn5l_forward(x, w_packed, b_packed, *, n_actions):
    B, n_obs = x.shape
    P = w_packed.shape[-1]

    # Pad the feature dim only to a sublane multiple of 8 (not the lane width).
    # The padded weight rows are zero, so the padded input columns are inert.
    k0 = _round_up(n_obs, 8)
    if k0 != n_obs:
        x = jnp.pad(x, ((0, 0), (0, k0 - n_obs)))

    # Batch tiling: one tile for tiny batches; otherwise guarantee >= 2 grid
    # steps so ("parallel",) can shard across both TensorCores on v7x; cap at
    # 512 rows per tile for step-overhead amortization on v5e/v6e.
    if B <= 8:
        TB = B
    else:
        TB = min(_round_up(-(-B // 2), 8), 512)
    grid = (pl.cdiv(B, TB),)

    # Explicit VMEM budget (double-buffered x/out tiles + resident params).
    need = (2 * TB * k0 * 4            # x tiles (f32), 2 buffers
            + 2 * TB * P * 4           # out tiles (f32), 2 buffers
            + 2 * 5 * P * P * 2        # packed bf16 weights (2 buffers allocated)
            + 2 * 8 * P * 4)           # packed biases (sublane-padded, f32)
    vmem_limit = int(min(max(2 * need + (4 << 20), 16 << 20), 48 << 20))

    out = pl.pallas_call(
        functools.partial(dqn5l_kernel, k0=k0),
        out_shape=jax.ShapeDtypeStruct((B, P), jnp.float32),
        grid_spec=pl.GridSpec(
            grid=grid,
            in_specs=[
                pl.BlockSpec((TB, k0), lambda i: (i, 0)),      # x: tiled on batch
                pl.BlockSpec((5, P, P), lambda i: (0, 0, 0)),  # weights: resident
                pl.BlockSpec((5, P), lambda i: (0, 0)),        # biases:  resident
            ],
            out_specs=pl.BlockSpec((TB, P), lambda i: (i, 0)), # lane-dense slab
        ),
        compiler_params=pltpu.CompilerParams(
            dimension_semantics=("parallel",),                  # megacore on v7x
            vmem_limit_bytes=vmem_limit,
        ),
    )(x, w_packed, b_packed)

    # Padded output lanes are exactly zero (zero weight cols / zero bias);
    # slice down to the requested number of actions.
    return out[:, :n_actions]


# -----------------------------------------------------------------------------
# Param init (mimics nn.Linear's U(-1/sqrt(fan_in), 1/sqrt(fan_in))), reference.
# -----------------------------------------------------------------------------
def init_params(key, n_observations, n_actions, n_neurons):
    dims = [(n_observations, n_neurons),
            (n_neurons, n_neurons),
            (n_neurons, n_neurons),
            (n_neurons, n_neurons),
            (n_neurons, n_actions)]
    params = {}
    for i, (fan_in, fan_out) in enumerate(dims, start=1):
        key, kw, kb = jax.random.split(key, 3)
        bound = 1.0 / (fan_in ** 0.5)
        # PyTorch layout: weight (out, in), bias (out,)
        params[f"w{i}"] = jax.random.uniform(
            kw, (fan_out, fan_in), jnp.float32, minval=-bound, maxval=bound)
        params[f"b{i}"] = jax.random.uniform(
            kb, (fan_out,), jnp.float32, minval=-bound, maxval=bound)
    return params


def reference_forward(x, params):
    h = x
    for i in range(1, 5):
        h = jnp.maximum(h @ params[f"w{i}"].T + params[f"b{i}"], 0.0)
    return h @ params["w5"].T + params["b5"]


if __name__ == "__main__":
    n_observations, n_actions, n_neurons = 16, 4, 32
    batch = 8

    key = jax.random.PRNGKey(0)
    key, kx = jax.random.split(key)
    x = jax.random.normal(kx, (batch, n_observations), jnp.float32)
    params = init_params(key, n_observations, n_actions, n_neurons)

    # One-time re-layout into kernel format (NOT in the per-call path).
    w_packed, b_packed = pack_params(params, n_observations, n_actions, n_neurons)

    forward = jax.jit(functools.partial(dqn5l_forward, n_actions=n_actions))
    out = jax.block_until_ready(forward(x, w_packed, b_packed))

    ref = reference_forward(x, params)
    assert out.shape == (batch, n_actions)
    # bf16 weights/activations with f32 accumulation -> not bitwise equal to
    # the f32 reference; errors are well below 1e-2 at these scales.
    assert jnp.allclose(out, ref, atol=3e-2, rtol=3e-2), (out, ref)

    print("KERNEL_OK")
</pallas_src>

<mosaic_0001>
module attributes {stable_mosaic.version = 11 : i64} {
  func.func @dqn5l_kernel(%arg0: i32, %arg1: memref<8x16xf32, #tpu.memory_space<vmem>>, %arg2: memref<5x128x128xbf16, #tpu.memory_space<vmem>>, %arg3: memref<5x128xf32, #tpu.memory_space<vmem>>, %arg4: memref<8x128xf32, #tpu.memory_space<vmem>>) attributes {dimension_semantics = [#tpu.dimension_semantics<parallel>], iteration_bounds = array<i64: 1>, scalar_prefetch = 0 : i64, scratch_operands = 0 : i64, tpu.core_type = #tpu.core_type<tc>, window_params = [{transform_indices = @transform_0, window_bounds = array<i64: 8, 16>}, {pipeline_mode = #tpu.pipeline_mode<synchronous>, transform_indices = @transform_1, window_bounds = array<i64: 5, 128, 128>}, {pipeline_mode = #tpu.pipeline_mode<synchronous>, transform_indices = @transform_2, window_bounds = array<i64: 5, 128>}, {transform_indices = @transform_3, window_bounds = array<i64: 8, 128>}]} {
    %c0 = arith.constant 0 : index
    %c0_0 = arith.constant 0 : index
    %0 = vector.load %arg1[%c0, %c0_0] : memref<8x16xf32, #tpu.memory_space<vmem>>, vector<8x16xf32>
    %1 = arith.truncf %0 : vector<8x16xf32> to vector<8x16xbf16>
    %c0_1 = arith.constant 0 : index
    %c0_2 = arith.constant 0 : index
    %c0_3 = arith.constant 0 : index
    %2 = vector.load %arg2[%c0_1, %c0_2, %c0_3] : memref<5x128x128xbf16, #tpu.memory_space<vmem>>, vector<1x16x128xbf16>
    %3 = vector.shape_cast %2 : vector<1x16x128xbf16> to vector<16x128xbf16>
    %cst = arith.constant dense<0.000000e+00> : vector<8x128xf32>
    %4 = tpu.matmul %1, %3, %cst {dimension_numbers = #tpu.dot_dimension_numbers<[1], [0], [0], [1], [0, 0, 1, 1], [], []>} : vector<8x16xbf16>, vector<16x128xbf16>, vector<8x128xf32> -> vector<8x128xf32>
    %c0_4 = arith.constant 0 : index
    %c0_5 = arith.constant 0 : index
    %5 = vector.load %arg3[%c0_4, %c0_5] : memref<5x128xf32, #tpu.memory_space<vmem>>, vector<1x128xf32>
    %6 = vector.broadcast %5 : vector<1x128xf32> to vector<8x128xf32>
    %7 = arith.addf %4, %6 : vector<8x128xf32>
    %cst_6 = arith.constant 0.000000e+00 : f32
    %8 = vector.broadcast %cst_6 : f32 to vector<8x128xf32>
    %9 = arith.maximumf %7, %8 : vector<8x128xf32>
    %10 = arith.truncf %9 : vector<8x128xf32> to vector<8x128xbf16>
    %c1 = arith.constant 1 : index
    %c0_7 = arith.constant 0 : index
    %c0_8 = arith.constant 0 : index
    %11 = vector.load %arg2[%c1, %c0_7, %c0_8] : memref<5x128x128xbf16, #tpu.memory_space<vmem>>, vector<1x128x128xbf16>
    %12 = vector.shape_cast %11 : vector<1x128x128xbf16> to vector<128x128xbf16>
    %cst_9 = arith.constant dense<0.000000e+00> : vector<8x128xf32>
    %13 = tpu.matmul %10, %12, %cst_9 {dimension_numbers = #tpu.dot_dimension_numbers<[1], [0], [0], [1], [0, 0, 1, 1], [], []>} : vector<8x128xbf16>, vector<128x128xbf16>, vector<8x128xf32> -> vector<8x128xf32>
    %c1_10 = arith.constant 1 : index
    %c0_11 = arith.constant 0 : index
    %14 = vector.load %arg3[%c1_10, %c0_11] : memref<5x128xf32, #tpu.memory_space<vmem>>, vector<1x128xf32>
    %15 = vector.broadcast %14 : vector<1x128xf32> to vector<8x128xf32>
    %16 = arith.addf %13, %15 : vector<8x128xf32>
    %cst_12 = arith.constant 0.000000e+00 : f32
    %17 = vector.broadcast %cst_12 : f32 to vector<8x128xf32>
    %18 = arith.maximumf %16, %17 : vector<8x128xf32>
    %19 = arith.truncf %18 : vector<8x128xf32> to vector<8x128xbf16>
    %c2 = arith.constant 2 : index
    %c0_13 = arith.constant 0 : index
    %c0_14 = arith.constant 0 : index
    %20 = vector.load %arg2[%c2, %c0_13, %c0_14] : memref<5x128x128xbf16, #tpu.memory_space<vmem>>, vector<1x128x128xbf16>
    %21 = vector.shape_cast %20 : vector<1x128x128xbf16> to vector<128x128xbf16>
    %cst_15 = arith.constant dense<0.000000e+00> : vector<8x128xf32>
    %22 = tpu.matmul %19, %21, %cst_15 {dimension_numbers = #tpu.dot_dimension_numbers<[1], [0], [0], [1], [0, 0, 1, 1], [], []>} : vector<8x128xbf16>, vector<128x128xbf16>, vector<8x128xf32> -> vector<8x128xf32>
    %c2_16 = arith.constant 2 : index
    %c0_17 = arith.constant 0 : index
    %23 = vector.load %arg3[%c2_16, %c0_17] : memref<5x128xf32, #tpu.memory_space<vmem>>, vector<1x128xf32>
    %24 = vector.broadcast %23 : vector<1x128xf32> to vector<8x128xf32>
    %25 = arith.addf %22, %24 : vector<8x128xf32>
    %cst_18 = arith.constant 0.000000e+00 : f32
    %26 = vector.broadcast %cst_18 : f32 to vector<8x128xf32>
    %27 = arith.maximumf %25, %26 : vector<8x128xf32>
    %28 = arith.truncf %27 : vector<8x128xf32> to vector<8x128xbf16>
    %c3 = arith.constant 3 : index
    %c0_19 = arith.constant 0 : index
    %c0_20 = arith.constant 0 : index
    %29 = vector.load %arg2[%c3, %c0_19, %c0_20] : memref<5x128x128xbf16, #tpu.memory_space<vmem>>, vector<1x128x128xbf16>
    %30 = vector.shape_cast %29 : vector<1x128x128xbf16> to vector<128x128xbf16>
    %cst_21 = arith.constant dense<0.000000e+00> : vector<8x128xf32>
    %31 = tpu.matmul %28, %30, %cst_21 {dimension_numbers = #tpu.dot_dimension_numbers<[1], [0], [0], [1], [0, 0, 1, 1], [], []>} : vector<8x128xbf16>, vector<128x128xbf16>, vector<8x128xf32> -> vector<8x128xf32>
    %c3_22 = arith.constant 3 : index
    %c0_23 = arith.constant 0 : index
    %32 = vector.load %arg3[%c3_22, %c0_23] : memref<5x128xf32, #tpu.memory_space<vmem>>, vector<1x128xf32>
    %33 = vector.broadcast %32 : vector<1x128xf32> to vector<8x128xf32>
    %34 = arith.addf %31, %33 : vector<8x128xf32>
    %cst_24 = arith.constant 0.000000e+00 : f32
    %35 = vector.broadcast %cst_24 : f32 to vector<8x128xf32>
    %36 = arith.maximumf %34, %35 : vector<8x128xf32>
    %37 = arith.truncf %36 : vector<8x128xf32> to vector<8x128xbf16>
    %c4 = arith.constant 4 : index
    %c0_25 = arith.constant 0 : index
    %c0_26 = arith.constant 0 : index
    %38 = vector.load %arg2[%c4, %c0_25, %c0_26] : memref<5x128x128xbf16, #tpu.memory_space<vmem>>, vector<1x128x128xbf16>
    %39 = vector.shape_cast %38 : vector<1x128x128xbf16> to vector<128x128xbf16>
    %cst_27 = arith.constant dense<0.000000e+00> : vector<8x128xf32>
    %40 = tpu.matmul %37, %39, %cst_27 {dimension_numbers = #tpu.dot_dimension_numbers<[1], [0], [0], [1], [0, 0, 1, 1], [], []>} : vector<8x128xbf16>, vector<128x128xbf16>, vector<8x128xf32> -> vector<8x128xf32>
    %c4_28 = arith.constant 4 : index
    %c0_29 = arith.constant 0 : index
    %41 = vector.load %arg3[%c4_28, %c0_29] : memref<5x128xf32, #tpu.memory_space<vmem>>, vector<1x128xf32>
    %42 = vector.broadcast %41 : vector<1x128xf32> to vector<8x128xf32>
    %43 = arith.addf %40, %42 : vector<8x128xf32>
    %c0_30 = arith.constant 0 : index
    %c0_31 = arith.constant 0 : index
    %44 = vector.load %arg4[%c0_30, %c0_31] : memref<8x128xf32, #tpu.memory_space<vmem>>, vector<8x128xf32>
    tpu.vector_store %arg4[%c0_30, %c0_31], %43 {strides = array<i32>} : memref<8x128xf32, #tpu.memory_space<vmem>>, vector<8x128xf32>,
    return
  }
  func.func @transform_0(%arg0: i32) -> (i32, i32) {
    %c0_i32 = arith.constant 0 : i32
    %c0_i32_0 = arith.constant 0 : i32
    return %arg0, %c0_i32 : i32, i32
  }
  func.func @transform_1(%arg0: i32) -> (i32, i32, i32) {
    %c0_i32 = arith.constant 0 : i32
    %c0_i32_0 = arith.constant 0 : i32
    %c0_i32_1 = arith.constant 0 : i32
    %c0_i32_2 = arith.constant 0 : i32
    return %c0_i32, %c0_i32_0, %c0_i32_1 : i32, i32, i32
  }
  func.func @transform_2(%arg0: i32) -> (i32, i32) {
    %c0_i32 = arith.constant 0 : i32
    %c0_i32_0 = arith.constant 0 : i32
    %c0_i32_1 = arith.constant 0 : i32
    return %c0_i32, %c0_i32_0 : i32, i32
  }
  func.func @transform_3(%arg0: i32) -> (i32, i32) {
    %c0_i32 = arith.constant 0 : i32
    %c0_i32_0 = arith.constant 0 : i32
    return %arg0, %c0_i32 : i32, i32
  }
}

</mosaic_0001>

<llo_original>
// kernel: dqn5l_forward.1
$region0: #{dqn5l_forward.1}
  #allocation0 [shape = 'u32[]', space=smem, size = 0x4, offset = 0x4, fixed_abs, tag = 'smem constant byte address 0x4 - core index']
  #allocation1 [shape = 'u32[72,128]{1,0:T(1,128)}', space=vmem, size = 0x9000, scoped, tag = 'internal scratch']
  %s0 = inlined_call_operand.hbm [shape: f32[8,16], index: 0, kind: input, shape index: {}]
  %s1 = inlined_call_operand.hbm [shape: bf16[5,128,128], index: 1, kind: input, shape index: {}]
  %s2 = inlined_call_operand.hbm [shape: f32[5,128], index: 2, kind: input, shape index: {}]
  %s3 = inlined_call_operand.vmem [shape: f32[8,128], index: 3, kind: output, shape index: {}]
  %s4 = sld [smem:[#allocation0]]
  $region34: #{dqn5l_forward.1} parent=0
    _
  %s6 = ssub.s32 1, %s4
  %s7 = scalar_select 0, %s6, %s4
  $region1: #{dqn5l_forward.1} parent=0
    #allocation2 [shape = 'u8[4096]{0}', space=vmem, size = 0x1000, scoped, tag = 'input window, operand 0, single buffered']
    #allocation3 [shape = 's32[1]{0}', space=sflag, size = 0x4, scoped, tag = 'scoped memory for dqn5l_forward.1']
    #allocation4 [shape = 'u8[163840]{0}', space=vmem, size = 0x28000, scoped, tag = 'input window, operand 1, single buffered']
    #allocation5 [shape = 's32[1]{0}', space=sflag, size = 0x4, scoped, tag = 'scoped memory for dqn5l_forward.1']
    #allocation6 [shape = 'u8[4096]{0}', space=vmem, size = 0x1000, scoped, tag = 'input window, operand 2, single buffered']
    %8 = vsyncpa [#allocation3], 0
    %9 = vsyncpa [#allocation5], 0
    // Predicated region
    $region2: #{dqn5l_forward.1} parent=1 // pred_check
      _
    $region3: #{dqn5l_forward.1} parent=1 // pred_check_branch
      %11 = sbr.rel (0) target = $region5
    $region4: #{dqn5l_forward.1} parent=1 // pred_region
      %13 = vsyncadd [#allocation3], 0
      %s15 = sshll.u32 %s0, 4
      %s16 = int_to_ptr.hbm [resolvable:$true] %s15
      %s17 = sshll.u32 [#allocation2], 4
      %s18 = int_to_ptr.vmem [resolvable:$true] %s17
      %20 = dma.hbm_to_vmem [thread:$0]  %s16, 128, %s18, [#allocation3]
    $region5: #{dqn5l_forward.1} parent=1 // pred_fallthru
      _
    // Predicated region
    $region6: #{dqn5l_forward.1} parent=1 // pred_check
      _
    $region7: #{dqn5l_forward.1} parent=1 // pred_check_branch
      %22 = sbr.rel (0) target = $region9
    $region8: #{dqn5l_forward.1} parent=1 // pred_region
      %24 = vsyncadd [#allocation5], 0
      %s25 = sshll.u32 %s1, 4
      %s26 = int_to_ptr.hbm [resolvable:$true] %s25
      %s27 = sshll.u32 [#allocation4], 4
      %s28 = int_to_ptr.vmem [resolvable:$true] %s27
      %33 = dma.hbm_to_vmem [thread:$0]  %s26, 5120, %s28, [#allocation5], 64, 64, 4
    $region9: #{dqn5l_forward.1} parent=1 // pred_fallthru
      _
    // Predicated region
    $region10: #{dqn5l_forward.1} parent=1 // pred_check
      _
    $region11: #{dqn5l_forward.1} parent=1 // pred_check_branch
      %35 = sbr.rel (0) target = $region13
    $region12: #{dqn5l_forward.1} parent=1 // pred_region
      %37 = vsyncadd [#allocation5], 0
      %s39 = sshll.u32 %s2, 4
      %s40 = int_to_ptr.hbm [resolvable:$true] %s39
      %s41 = sshll.u32 [#allocation6], 4
      %s42 = int_to_ptr.vmem [resolvable:$true] %s41
      %44 = dma.hbm_to_vmem [thread:$0]  %s40, 128, %s42, [#allocation5]
    $region13: #{dqn5l_forward.1} parent=1 // pred_fallthru
      _
    // Predicated region
    $region14: #{dqn5l_forward.1} parent=1 // pred_check
      _
    $region15: #{dqn5l_forward.1} parent=1 // pred_check_branch
      %46 = sbr.rel (0) target = $region17
    $region16: #{dqn5l_forward.1} parent=1 // pred_region
      %48 = dma.done [#allocation3], 128
    $region17: #{dqn5l_forward.1} parent=1 // pred_fallthru
      _
    // Predicated region
    $region18: #{dqn5l_forward.1} parent=1 // pred_check
      _
    $region19: #{dqn5l_forward.1} parent=1 // pred_check_branch
      %50 = sbr.rel (0) target = $region21
    $region20: #{dqn5l_forward.1} parent=1 // pred_region
      %52 = dma.done [#allocation5], 5120
    $region21: #{dqn5l_forward.1} parent=1 // pred_fallthru
      _
    // Predicated region
    $region22: #{dqn5l_forward.1} parent=1 // pred_check
      _
    $region23: #{dqn5l_forward.1} parent=1 // pred_check_branch
      %54 = sbr.rel (0) target = $region25
    $region24: #{dqn5l_forward.1} parent=1 // pred_region
      %56 = dma.done [#allocation5], 128
    $region25: #{dqn5l_forward.1} parent=1 // pred_fallthru
      _
    %v58 = vld [vmem:[#allocation2] sm:$0xff]
    %v59 = vpack.c.bf16 %v58, %v58
    %v60 = vld [vmem:[#allocation4] sm:$0xf]
    %v61 = vld [vmem:[#allocation4 + $0x4] sm:$0xf]
    %v62 = vld [vmem:[#allocation6] sm:$0x1]
    %v63 = vperm.slane %v62, 0
    %v66 = vunpack.c.l.b16 %v60
    %v67 = vunpack.c.l.b16 %v61
    %v68 = vpack.c.b16 %v67, %v66
    %vm70 = vcmask 130048
    %v72 = vsel %vm70, %v59, 0
    %74 = vmatpush.bf16.msra.mxu0 0
    %75 = vmatpush.bf16.msra.mxu0 0
    %76 = vmatpush.bf16.msra.mxu0 0
    %77 = vmatpush.bf16.msra.mxu0 0
    %78 = vmatpush.bf16.msra.mxu0 0
    %79 = vmatpush.bf16.msra.mxu0 0
    %80 = vmatpush.bf16.msra.mxu0 0
    %81 = vmatpush.bf16.msra.mxu0 %v68
    %82 = vmatmul.bf16.gmra.mxu0 %v72
    %v83 = vpop.f32.mrf.mxu0
    %v84 = vadd.f32 %v63, %v83
    %v85 = vpop.f32.mrf.mxu0
    %86 = vdwg.mxu0
    %v87 = vmax.f32 %v84, 0.0
    %v88 = vpack.c.bf16 %v87, %v87
    %s89 = scalar_lea.vmem [#allocation4], 64
    %v90 = vld [vmem:[%s89] sm:$0xf]
    %v91 = vld [vmem:[%s89 + $0x4] sm:$0xf]
    %v92 = vld [vmem:[%s89 + $0x8] sm:$0xf]
    %v93 = vld [vmem:[%s89 + $0xc] sm:$0xf]
    %v94 = vld [vmem:[%s89 + $0x10] sm:$0xf]
    %v95 = vld [vmem:[%s89 + $0x14] sm:$0xf]
    %v96 = vld [vmem:[%s89 + $0x18] sm:$0xf]
    %v97 = vld [vmem:[%s89 + $0x1c] sm:$0xf]
    %v98 = vld [vmem:[%s89 + $0x20] sm:$0xf]
    %v99 = vld [vmem:[%s89 + $0x24] sm:$0xf]
    %v100 = vld [vmem:[%s89 + $0x28] sm:$0xf]
    %v101 = vld [vmem:[%s89 + $0x2c] sm:$0xf]
    %v102 = vld [vmem:[%s89 + $0x30] sm:$0xf]
    %v103 = vld [vmem:[%s89 + $0x34] sm:$0xf]
    %v104 = vld [vmem:[%s89 + $0x38] sm:$0xf]
    %v105 = vld [vmem:[%s89 + $0x3c] sm:$0xf]
    %v106 = vld [vmem:[#allocation6 + $0x1] sm:$0x1]
    %v107 = vperm.slane %v106, 0
    %v124 = vunpack.c.l.b16 %v90
    %v125 = vunpack.c.l.b16 %v91
    %v126 = vunpack.c.l.b16 %v92
    %v127 = vunpack.c.l.b16 %v93
    %v128 = vunpack.c.l.b16 %v94
    %v129 = vunpack.c.l.b16 %v95
    %v130 = vunpack.c.l.b16 %v96
    %v131 = vunpack.c.l.b16 %v97
    %v132 = vunpack.c.l.b16 %v98
    %v133 = vunpack.c.l.b16 %v99
    %v134 = vunpack.c.l.b16 %v100
    %v135 = vunpack.c.l.b16 %v101
    %v136 = vunpack.c.l.b16 %v102
    %v137 = vunpack.c.l.b16 %v103
    %v138 = vunpack.c.l.b16 %v104
    %v139 = vunpack.c.l.b16 %v105
    %v140 = vpack.c.b16 %v125, %v124
    %v141 = vpack.c.b16 %v127, %v126
    %v142 = vpack.c.b16 %v129, %v128
    %v143 = vpack.c.b16 %v131, %v130
    %v144 = vpack.c.b16 %v133, %v132
    %v145 = vpack.c.b16 %v135, %v134
    %v146 = vpack.c.b16 %v137, %v136
    %v147 = vpack.c.b16 %v139, %v138
    %156 = vmatpush.bf16.msra.mxu0 %v147
    %157 = vmatpush.bf16.msra.mxu0 %v146
    %158 = vmatpush.bf16.msra.mxu0 %v145
    %159 = vmatpush.bf16.msra.mxu0 %v144
    %160 = vmatpush.bf16.msra.mxu0 %v143
    %161 = vmatpush.bf16.msra.mxu0 %v142
    %162 = vmatpush.bf16.msra.mxu0 %v141
    %163 = vmatpush.bf16.msra.mxu0 %v140
    %164 = vmatmul.bf16.gmra.mxu0 %v88
    %v165 = vpop.f32.mrf.mxu0
    %v166 = vadd.f32 %v107, %v165
    %v167 = vpop.f32.mrf.mxu0
    %168 = vdwg.mxu0
    %v169 = vmax.f32 %v166, 0.0
    %v170 = vpack.c.bf16 %v169, %v169
    %s171 = scalar_lea.vmem [#allocation4], 128
    %v172 = vld [vmem:[%s171] sm:$0xf]
    %v173 = vld [vmem:[%s171 + $0x4] sm:$0xf]
    %v174 = vld [vmem:[%s171 + $0x8] sm:$0xf]
    %v175 = vld [vmem:[%s171 + $0xc] sm:$0xf]
    %v176 = vld [vmem:[%s171 + $0x10] sm:$0xf]
    %v177 = vld [vmem:[%s171 + $0x14] sm:$0xf]
    %v178 = vld [vmem:[%s171 + $0x18] sm:$0xf]
    %v179 = vld [vmem:[%s171 + $0x1c] sm:$0xf]
    %v180 = vld [vmem:[%s171 + $0x20] sm:$0xf]
    %v181 = vld [vmem:[%s171 + $0x24] sm:$0xf]
    %v182 = vld [vmem:[%s171 + $0x28] sm:$0xf]
    %v183 = vld [vmem:[%s171 + $0x2c] sm:$0xf]
    %v184 = vld [vmem:[%s171 + $0x30] sm:$0xf]
    %v185 = vld [vmem:[%s171 + $0x34] sm:$0xf]
    %v186 = vld [vmem:[%s171 + $0x38] sm:$0xf]
    %v187 = vld [vmem:[%s171 + $0x3c] sm:$0xf]
    %v188 = vld [vmem:[#allocation6 + $0x2] sm:$0x1]
    %v189 = vperm.slane %v188, 0
    %v206 = vunpack.c.l.b16 %v172
    %v207 = vunpack.c.l.b16 %v173
    %v208 = vunpack.c.l.b16 %v174
    %v209 = vunpack.c.l.b16 %v175
    %v210 = vunpack.c.l.b16 %v176
    %v211 = vunpack.c.l.b16 %v177
    %v212 = vunpack.c.l.b16 %v178
    %v213 = vunpack.c.l.b16 %v179
    %v214 = vunpack.c.l.b16 %v180
    %v215 = vunpack.c.l.b16 %v181
    %v216 = vunpack.c.l.b16 %v182
    %v217 = vunpack.c.l.b16 %v183
    %v218 = vunpack.c.l.b16 %v184
    %v219 = vunpack.c.l.b16 %v185
    %v220 = vunpack.c.l.b16 %v186
    %v221 = vunpack.c.l.b16 %v187
    %v222 = vpack.c.b16 %v207, %v206
    %v223 = vpack.c.b16 %v209, %v208
    %v224 = vpack.c.b16 %v211, %v210
    %v225 = vpack.c.b16 %v213, %v212
    %v226 = vpack.c.b16 %v215, %v214
    %v227 = vpack.c.b16 %v217, %v216
    %v228 = vpack.c.b16 %v219, %v218
    %v229 = vpack.c.b16 %v221, %v220
    %238 = vmatpush.bf16.msra.mxu0 %v229
    %239 = vmatpush.bf16.msra.mxu0 %v228
    %240 = vmatpush.bf16.msra.mxu0 %v227
    %241 = vmatpush.bf16.msra.mxu0 %v226
    %242 = vmatpush.bf16.msra.mxu0 %v225
    %243 = vmatpush.bf16.msra.mxu0 %v224
    %244 = vmatpush.bf16.msra.mxu0 %v223
    %245 = vmatpush.bf16.msra.mxu0 %v222
    %246 = vmatmul.bf16.gmra.mxu0 %v170
    %v247 = vpop.f32.mrf.mxu0
    %v248 = vadd.f32 %v189, %v247
    %v249 = vpop.f32.mrf.mxu0
    %250 = vdwg.mxu0
    %v251 = vmax.f32 %v248, 0.0
    %v252 = vpack.c.bf16 %v251, %v251
    %s253 = scalar_lea.vmem [#allocation4], 192
    %v254 = vld [vmem:[%s253] sm:$0xf]
    %v255 = vld [vmem:[%s253 + $0x4] sm:$0xf]
    %v256 = vld [vmem:[%s253 + $0x8] sm:$0xf]
    %v257 = vld [vmem:[%s253 + $0xc] sm:$0xf]
    %v258 = vld [vmem:[%s253 + $0x10] sm:$0xf]
    %v259 = vld [vmem:[%s253 + $0x14] sm:$0xf]
    %v260 = vld [vmem:[%s253 + $0x18] sm:$0xf]
    %v261 = vld [vmem:[%s253 + $0x1c] sm:$0xf]
    %v262 = vld [vmem:[%s253 + $0x20] sm:$0xf]
    %v263 = vld [vmem:[%s253 + $0x24] sm:$0xf]
    %v264 = vld [vmem:[%s253 + $0x28] sm:$0xf]
    %v265 = vld [vmem:[%s253 + $0x2c] sm:$0xf]
    %v266 = vld [vmem:[%s253 + $0x30] sm:$0xf]
    %v267 = vld [vmem:[%s253 + $0x34] sm:$0xf]
    %v268 = vld [vmem:[%s253 + $0x38] sm:$0xf]
    %v269 = vld [vmem:[%s253 + $0x3c] sm:$0xf]
    %v270 = vld [vmem:[#allocation6 + $0x3] sm:$0x1]
    %v271 = vperm.slane %v270, 0
    %v288 = vunpack.c.l.b16 %v254
    %v289 = vunpack.c.l.b16 %v255
    %v290 = vunpack.c.l.b16 %v256
    %v291 = vunpack.c.l.b16 %v257
    %v292 = vunpack.c.l.b16 %v258
    %v293 = vunpack.c.l.b16 %v259
    %v294 = vunpack.c.l.b16 %v260
    %v295 = vunpack.c.l.b16 %v261
    %v296 = vunpack.c.l.b16 %v262
    %v297 = vunpack.c.l.b16 %v263
    %v298 = vunpack.c.l.b16 %v264
    %v299 = vunpack.c.l.b16 %v265
    %v300 = vunpack.c.l.b16 %v266
    %v301 = vunpack.c.l.b16 %v267
    %v302 = vunpack.c.l.b16 %v268
    %v303 = vunpack.c.l.b16 %v269
    %v304 = vpack.c.b16 %v289, %v288
    %v305 = vpack.c.b16 %v291, %v290
    %v306 = vpack.c.b16 %v293, %v292
    %v307 = vpack.c.b16 %v295, %v294
    %v308 = vpack.c.b16 %v297, %v296
    %v309 = vpack.c.b16 %v299, %v298
    %v310 = vpack.c.b16 %v301, %v300
    %v311 = vpack.c.b16 %v303, %v302
    %320 = vmatpush.bf16.msra.mxu0 %v311
    %321 = vmatpush.bf16.msra.mxu0 %v310
    %322 = vmatpush.bf16.msra.mxu0 %v309
    %323 = vmatpush.bf16.msra.mxu0 %v308
    %324 = vmatpush.bf16.msra.mxu0 %v307
    %325 = vmatpush.bf16.msra.mxu0 %v306
    %326 = vmatpush.bf16.msra.mxu0 %v305
    %327 = vmatpush.bf16.msra.mxu0 %v304
    %328 = vmatmul.bf16.gmra.mxu0 %v252
    %v329 = vpop.f32.mrf.mxu0
    %v330 = vadd.f32 %v271, %v329
    %v331 = vpop.f32.mrf.mxu0
    %332 = vdwg.mxu0
    %v333 = vmax.f32 %v330, 0.0
    %v334 = vpack.c.bf16 %v333, %v333
    %s335 = scalar_lea.vmem [#allocation4], 256
    %v336 = vld [vmem:[%s335] sm:$0xf]
    %v337 = vld [vmem:[%s335 + $0x4] sm:$0xf]
    %v338 = vld [vmem:[%s335 + $0x8] sm:$0xf]
    %v339 = vld [vmem:[%s335 + $0xc] sm:$0xf]
    %v340 = vld [vmem:[%s335 + $0x10] sm:$0xf]
    %v341 = vld [vmem:[%s335 + $0x14] sm:$0xf]
    %v342 = vld [vmem:[%s335 + $0x18] sm:$0xf]
    %v343 = vld [vmem:[%s335 + $0x1c] sm:$0xf]
    %v344 = vld [vmem:[%s335 + $0x20] sm:$0xf]
    %v345 = vld [vmem:[%s335 + $0x24] sm:$0xf]
    %v346 = vld [vmem:[%s335 + $0x28] sm:$0xf]
    %v347 = vld [vmem:[%s335 + $0x2c] sm:$0xf]
    %v348 = vld [vmem:[%s335 + $0x30] sm:$0xf]
    %v349 = vld [vmem:[%s335 + $0x34] sm:$0xf]
    %v350 = vld [vmem:[%s335 + $0x38] sm:$0xf]
    %v351 = vld [vmem:[%s335 + $0x3c] sm:$0xf]
    %v352 = vld [vmem:[#allocation6 + $0x4] sm:$0x1]
    %v353 = vperm.slane %v352, 0
    %v370 = vunpack.c.l.b16 %v336
    %v371 = vunpack.c.l.b16 %v337
    %v372 = vunpack.c.l.b16 %v338
    %v373 = vunpack.c.l.b16 %v339
    %v374 = vunpack.c.l.b16 %v340
    %v375 = vunpack.c.l.b16 %v341
    %v376 = vunpack.c.l.b16 %v342
    %v377 = vunpack.c.l.b16 %v343
    %v378 = vunpack.c.l.b16 %v344
    %v379 = vunpack.c.l.b16 %v345
    %v380 = vunpack.c.l.b16 %v346
    %v381 = vunpack.c.l.b16 %v347
    %v382 = vunpack.c.l.b16 %v348
    %v383 = vunpack.c.l.b16 %v349
    %v384 = vunpack.c.l.b16 %v350
    %v385 = vunpack.c.l.b16 %v351
    %v386 = vpack.c.b16 %v371, %v370
    %v387 = vpack.c.b16 %v373, %v372
    %v388 = vpack.c.b16 %v375, %v374
    %v389 = vpack.c.b16 %v377, %v376
    %v390 = vpack.c.b16 %v379, %v378
    %v391 = vpack.c.b16 %v381, %v380
    %v392 = vpack.c.b16 %v383, %v382
    %v393 = vpack.c.b16 %v385, %v384
    %402 = vmatpush.bf16.msra.mxu0 %v393
    %403 = vmatpush.bf16.msra.mxu0 %v392
    %404 = vmatpush.bf16.msra.mxu0 %v391
    %405 = vmatpush.bf16.msra.mxu0 %v390
    %406 = vmatpush.bf16.msra.mxu0 %v389
    %407 = vmatpush.bf16.msra.mxu0 %v388
    %408 = vmatpush.bf16.msra.mxu0 %v387
    %409 = vmatpush.bf16.msra.mxu0 %v386
    %410 = vmatmul.bf16.gmra.mxu0 %v334
    %v411 = vpop.f32.mrf.mxu0
    %v412 = vadd.f32 %v353, %v411
    %v413 = vpop.f32.mrf.mxu0
    %414 = vdwg.mxu0
    %415 = vst [vmem:[%s3] sm:$0xff] %v412
    // Predicated region
    $region26: #{dqn5l_forward.1} parent=1 // pred_check
      _
    $region27: #{dqn5l_forward.1} parent=1 // pred_check_branch
      %417 = sbr.rel (0) target = $region29
    $region28: #{dqn5l_forward.1} parent=1 // pred_region
      _
    $region29: #{dqn5l_forward.1} parent=1 // pred_fallthru
      _
    // Predicated region
    $region30: #{dqn5l_forward.1} parent=1 // pred_check
      _
    $region31: #{dqn5l_forward.1} parent=1 // pred_check_branch
      %419 = sbr.rel (0) target = $region33
    $region32: #{dqn5l_forward.1} parent=1 // pred_region
      _
    $region33: #{dqn5l_forward.1} parent=1 // pred_fallthru
      _
    %420 = vsyncpa [#allocation3], 1
    %421 = vsyncpa [#allocation5], 1

</llo_original>
